<compile_context>
chip_gen: v7x
topology: tpu7x:2x2x1
jax: 0.10.0
libtpu: 0.0.40
codegen_flags: <defaults>
</compile_context>

<pallas_src>
import functools

import numpy as np
import jax
import jax.numpy as jnp
from jax.experimental import pallas as pl
from jax.experimental.pallas import tpu as pltpu


def _round_up(x, m):
    return ((x + m - 1) // m) * m


def multi_edge_agg_kernel(tmin_ref, tmax_ref,                       # scalar-prefetch (SMEM)
                          idx_ref, attr_ref, aux_ref,               # streamed inputs
                          w1_ref, b1_ref, w2p_ref, b2p_ref,         # resident MLP params
                          out_ref,                                  # [tG, Wp] f32 slab
                          acc_attr, acc_aux,                        # VMEM scratch
                          *, n_hidden):
    gi = pl.program_id(0)            # group-tile index ("parallel")
    ei = pl.program_id(1)            # edge-tile index  (reduction, "arbitrary")
    tG = out_ref.shape[0]
    tE = idx_ref.shape[1]
    g_lo = gi * tG

    @pl.when(ei == 0)
    def _():
        acc_attr[...] = jnp.zeros_like(acc_attr)
        acc_aux[...] = jnp.zeros_like(acc_aux)

    # Edges are pre-sorted by group, so each E tile spans a narrow band of groups.
    # Skip (gi, ei) tiles whose band does not touch [g_lo, g_lo + tG).
    @pl.when((tmax_ref[ei] >= g_lo) & (tmin_ref[ei] < g_lo + tG))
    def _():
        # One-hot scatter matrix built from shifted ids vs a loop-invariant iota
        # (the subtract is on the [1, tE] row only; padding ids are -1 -> no match).
        ids_local = idx_ref[...] - g_lo                                    # [1, tE]
        giota = jax.lax.broadcasted_iota(jnp.int32, (tG, tE), 0)           # constant
        oh = (giota == ids_local).astype(jnp.bfloat16)                     # [tG, tE]

        # MXU segment sums, accumulated in f32 scratch.
        acc_attr[...] += jnp.dot(oh, attr_ref[...],
                                 preferred_element_type=jnp.float32)       # [tG, H]
        acc_aux[...] += jnp.dot(oh, aux_ref[...],
                                preferred_element_type=jnp.float32)        # [tG, 8]

    @pl.when(ei == pl.num_programs(1) - 1)
    def _():
        H = n_hidden
        seg = acc_attr[...]                    # scatter_sum(edge_attr)        [tG, H]
        aux = acc_aux[...]
        hi = aux[:, 0:2]                       # sum of id hi-limbs (src, dst) [tG, 2]
        lo = aux[:, 2:4]                       # sum of id lo-limbs            [tG, 2]
        counts = aux[:, 4:5]                   # edges per group               [tG, 1]

        # scatter(edge_index, reduce='mean'): exact integer limb sums, one f32 divide
        # (kept exact instead of approx reciprocal for bit-accurate means).
        mean_idx = (256.0 * hi + lo) / jnp.maximum(counts, 1.0)

        # GIN MLP: Linear -> ReLU -> Linear; w2/b2 are zero-padded to Wp lanes so the
        # second matmul already yields the lane-dense [tG, Wp] output slab.
        h = jnp.dot(seg, w1_ref[...], preferred_element_type=jnp.float32) + b1_ref[...]
        h = jnp.maximum(h, 0.0)
        out_ref[...] = jnp.dot(h, w2p_ref[...],
                               preferred_element_type=jnp.float32) + b2p_ref[...]

        # Overwrite the 3 mean/count columns with narrow stores (runs once per G tile).
        out_ref[:, H:H + 2] = mean_idx
        out_ref[:, H + 2:H + 3] = counts


@functools.partial(jax.jit, static_argnums=(4, 5, 6))
def _agg_pallas(edge_index, edge_attr, inverse, params, num_groups, tile_e, tile_g):
    E, H = edge_attr.shape
    w1, b1, w2, b2 = params
    G = num_groups

    # ---- tile sizing ------------------------------------------------------------
    # tG: multiple of 16 (bf16 sublane packing), capped at 256 (MXU rows on v6e/v7x);
    # at least 2 G tiles when G is non-trivial so v7x's 2 TensorCores both get work.
    Gp = _round_up(max(G, 16), 16)
    if tile_g is not None:
        tG = _round_up(tile_g, 16)
    elif Gp <= 32:
        tG = Gp
    else:
        tG = min(256, _round_up(pl.cdiv(Gp, 2), 16))
    Gp = _round_up(Gp, tG)

    # tE: default 2048 (step-overhead / DMA amortization); 128-aligned.
    Ep = _round_up(max(E, 128), 128)
    if tile_e is not None:
        tE = _round_up(tile_e, 128)
    else:
        tE = Ep if Ep <= 2048 else 2048
    Ep = _round_up(Ep, tE)

    W = H + 3                                  # attr | mean(src) mean(dst) | count
    Wp = _round_up(W, 128)

    # ---- glue: sort edges by group (enables per-tile group-band skipping) --------
    order = jnp.argsort(inverse)
    inv_s = inverse[order].astype(jnp.int32)
    attr_s = edge_attr[order].astype(jnp.bfloat16)
    src = edge_index[0][order].astype(jnp.int32)
    dst = edge_index[1][order].astype(jnp.int32)

    # Padded group ids (-1 never matches a group row).
    inv_pad = jnp.full((1, Ep), -1, jnp.int32).at[0, :E].set(inv_s)

    # Narrow streamed operands (no 128-lane padded fused RHS in HBM).
    attr_pad = jnp.zeros((Ep, H), jnp.bfloat16).at[:E].set(attr_s)
    # hi/lo limbs are < 256 -> exact in bf16 (valid for node ids < 65536).
    aux_cols = jnp.stack([src // 256, dst // 256, src % 256, dst % 256,
                          jnp.ones((E,), jnp.int32)], axis=1).astype(jnp.bfloat16)
    aux_pad = jnp.zeros((Ep, 8), jnp.bfloat16).at[:E, :5].set(aux_cols)

    # Per-E-tile group band [min, max] for the scalar-prefetch skip test.
    nE = Ep // tE
    inv2d = inv_pad.reshape(nE, tE)
    tile_max = jnp.max(inv2d, axis=1).astype(jnp.int32)
    tile_min = jnp.min(jnp.where(inv2d >= 0, inv2d, jnp.int32(2 ** 30)),
                       axis=1).astype(jnp.int32)

    # MLP params; w2/b2 zero-padded to the lane-dense output width.
    b1r = b1.reshape(1, H).astype(jnp.float32)
    w2p = jnp.zeros((H, Wp), jnp.float32).at[:, :H].set(w2)
    b2p = jnp.zeros((1, Wp), jnp.float32).at[0, :H].set(b2)

    grid = (Gp // tG, Ep // tE)
    out = pl.pallas_call(
        functools.partial(multi_edge_agg_kernel, n_hidden=H),
        out_shape=jax.ShapeDtypeStruct((Gp, Wp), jnp.float32),
        grid_spec=pltpu.PrefetchScalarGridSpec(
            num_scalar_prefetch=2,                       # tile_min, tile_max -> SMEM
            grid=grid,
            in_specs=[
                pl.BlockSpec((1, tE), lambda gi, ei, lo, hi: (0, ei)),    # group ids
                pl.BlockSpec((tE, H), lambda gi, ei, lo, hi: (ei, 0)),    # edge_attr bf16
                pl.BlockSpec((tE, 8), lambda gi, ei, lo, hi: (ei, 0)),    # id limbs + ones
                pl.BlockSpec((H, H), lambda gi, ei, lo, hi: (0, 0)),      # w1
                pl.BlockSpec((1, H), lambda gi, ei, lo, hi: (0, 0)),      # b1
                pl.BlockSpec((H, Wp), lambda gi, ei, lo, hi: (0, 0)),     # w2 (padded)
                pl.BlockSpec((1, Wp), lambda gi, ei, lo, hi: (0, 0)),     # b2 (padded)
            ],
            out_specs=pl.BlockSpec((tG, Wp), lambda gi, ei, lo, hi: (gi, 0)),
            scratch_shapes=[pltpu.VMEM((tG, H), jnp.float32),
                            pltpu.VMEM((tG, 8), jnp.float32)],
        ),
        compiler_params=pltpu.CompilerParams(
            dimension_semantics=("parallel", "arbitrary")),
    )(tile_min, tile_max, inv_pad, attr_pad, aux_pad, w1, b1r, w2p, b2p)

    new_attr = out[:G, :H]                     # [G, H]
    new_edge_index = out[:G, H:H + 2].T        # [2, G] float means
    return new_edge_index, new_attr


def multi_edge_agg_forward(edge_index, edge_attr, simp_edge_batch, times, params,
                           num_groups=None, tile_e=None, tile_g=None):
    """agg_type='gin' forward. `times` is unused for this agg_type (API parity).

    Pass `num_groups` (the number of unique simp_edge_batch values, or a static
    upper bound precomputed upstream) to avoid any host sync.  Passing a value
    smaller than the true unique count silently truncates (as jnp.unique does).
    """
    del times
    if num_groups is None:
        # TODO(synk): torch.unique has a data-dependent output size; when the group
        # count is not supplied statically, one host np.unique sizes the output.
        num_groups = int(np.unique(np.asarray(simp_edge_batch)).shape[0])
    # inverse indices computed on device (rank of each id among the sorted uniques)
    _, inverse = jnp.unique(simp_edge_batch, return_inverse=True, size=num_groups)
    inverse = inverse.reshape(-1).astype(jnp.int32)
    new_edge_index, new_edge_attr = _agg_pallas(
        edge_index, edge_attr, inverse, params, num_groups, tile_e, tile_g)
    return new_edge_index, new_edge_attr, inverse


def init_gin_params(key, n_hidden):
    k1, k2 = jax.random.split(key)
    scale = 1.0 / np.sqrt(n_hidden)
    w1 = jax.random.uniform(k1, (n_hidden, n_hidden), jnp.float32, -scale, scale)
    w2 = jax.random.uniform(k2, (n_hidden, n_hidden), jnp.float32, -scale, scale)
    b1 = jnp.zeros((n_hidden,), jnp.float32)
    b2 = jnp.zeros((n_hidden,), jnp.float32)
    return (w1, b1, w2, b2)


def reference_forward(edge_index, edge_attr, simp_edge_batch, params):
    """Pure-JAX reference (uses the same bf16 quantization of edge_attr as the kernel)."""
    uniq, inverse = np.unique(np.asarray(simp_edge_batch), return_inverse=True)
    G = int(uniq.shape[0])
    inv = jnp.asarray(inverse.reshape(-1), dtype=jnp.int32)
    eidx_f = jnp.asarray(edge_index, dtype=jnp.float32)                    # [2, E]
    seg_idx = jax.ops.segment_sum(eidx_f.T, inv, num_segments=G)           # [G, 2]
    counts = jax.ops.segment_sum(jnp.ones((edge_attr.shape[0],), jnp.float32), inv,
                                 num_segments=G)
    new_eidx = (seg_idx / jnp.maximum(counts, 1.0)[:, None]).T             # [2, G]
    attr_bf = edge_attr.astype(jnp.bfloat16).astype(jnp.float32)
    seg = jax.ops.segment_sum(attr_bf, inv, num_segments=G)
    w1, b1, w2, b2 = params
    h = jnp.maximum(seg @ w1 + b1, 0.0)
    out = h @ w2 + b2
    return new_eidx, out, inv


if __name__ == "__main__":
    E = 288          # number of (multi-)edges -> 3 E-tiles of 128 with tile_e=128
    H = 32           # n_hidden
    N_NODES = 1000   # node ids > 256 exercise the exact hi/lo limb path
    N_GROUPS = 40    # simplified-edge batch ids drawn from [0, 40)

    key = jax.random.PRNGKey(0)
    k_attr, k_src, k_dst, k_grp, k_t = jax.random.split(key, 5)

    edge_attr = jax.random.normal(k_attr, (E, H), dtype=jnp.float32)
    edge_index = jnp.stack([
        jax.random.randint(k_src, (E,), 0, N_NODES),
        jax.random.randint(k_dst, (E,), 0, N_NODES),
    ], axis=0)                                                   # [2, E] int32
    simp_edge_batch = jax.random.randint(k_grp, (E,), 0, N_GROUPS).astype(jnp.int32)
    times = jax.random.uniform(k_t, (E,), dtype=jnp.float32)     # unused for 'gin'

    params = init_gin_params(jax.random.PRNGKey(1), H)

    # num_groups supplied from (host) upstream info so the jitted path has no sync.
    num_groups = int(np.unique(np.asarray(simp_edge_batch)).shape[0])

    new_edge_index, new_edge_attr, inverse_indices = multi_edge_agg_forward(
        edge_index, edge_attr, simp_edge_batch, times, params,
        num_groups=num_groups, tile_e=128)
    jax.block_until_ready((new_edge_index, new_edge_attr, inverse_indices))

    # correctness check vs. pure-JAX reference
    ref_eidx, ref_attr, ref_inv = reference_forward(
        edge_index, edge_attr, simp_edge_batch, params)
    np.testing.assert_allclose(np.asarray(new_edge_index), np.asarray(ref_eidx),
                               rtol=1e-5, atol=1e-5)
    np.testing.assert_allclose(np.asarray(new_edge_attr), np.asarray(ref_attr),
                               rtol=1e-4, atol=1e-4)
    np.testing.assert_array_equal(np.asarray(inverse_indices), np.asarray(ref_inv))

    print("KERNEL_OK")
</pallas_src>

<mosaic_0001>
module attributes {stable_mosaic.version = 11 : i64} {
  func.func @multi_edge_agg_kernel(%arg0: i32, %arg1: i32, %arg2: memref<3xi32, #tpu.memory_space<smem>>, %arg3: memref<3xi32, #tpu.memory_space<smem>>, %arg4: memref<1x128xi32, #tpu.memory_space<vmem>>, %arg5: memref<128x32xbf16, #tpu.memory_space<vmem>>, %arg6: memref<128x8xbf16, #tpu.memory_space<vmem>>, %arg7: memref<32x32xf32, #tpu.memory_space<vmem>>, %arg8: memref<1x32xf32, #tpu.memory_space<vmem>>, %arg9: memref<32x128xf32, #tpu.memory_space<vmem>>, %arg10: memref<1x128xf32, #tpu.memory_space<vmem>>, %arg11: memref<32x128xf32, #tpu.memory_space<vmem>>, %arg12: memref<32x32xf32, #tpu.memory_space<vmem>>, %arg13: memref<32x8xf32, #tpu.memory_space<vmem>>) attributes {dimension_semantics = [#tpu.dimension_semantics<parallel>, #tpu.dimension_semantics<arbitrary>], iteration_bounds = array<i64: 2, 3>, scalar_prefetch = 2 : i64, scratch_operands = 2 : i64, tpu.core_type = #tpu.core_type<tc>, window_params = [{transform_indices = @transform_0, window_bounds = array<i64: 1, 128>}, {transform_indices = @transform_1, window_bounds = array<i64: 128, 32>}, {transform_indices = @transform_2, window_bounds = array<i64: 128, 8>}, {pipeline_mode = #tpu.pipeline_mode<synchronous>, transform_indices = @transform_3, window_bounds = array<i64: 32, 32>}, {pipeline_mode = #tpu.pipeline_mode<synchronous>, transform_indices = @transform_4, window_bounds = array<i64: 1, 32>}, {pipeline_mode = #tpu.pipeline_mode<synchronous>, transform_indices = @transform_5, window_bounds = array<i64: 32, 128>}, {pipeline_mode = #tpu.pipeline_mode<synchronous>, transform_indices = @transform_6, window_bounds = array<i64: 1, 128>}, {transform_indices = @transform_7, window_bounds = array<i64: 32, 128>}]} {
    %c32_i32 = arith.constant 32 : i32
    %0 = arith.muli %arg0, %c32_i32 : i32
    %c0_i32 = arith.constant 0 : i32
    %1 = arith.cmpi eq, %arg1, %c0_i32 : i32
    %2 = arith.extui %1 : i1 to i32
    %c0_i32_0 = arith.constant 0 : i32
    %3 = arith.cmpi ne, %2, %c0_i32_0 : i32
    scf.if %3 {
      %cst = arith.constant 0.000000e+00 : f32
      %17 = vector.broadcast %cst : f32 to vector<32x32xf32>
      %c0 = arith.constant 0 : index
      %c0_4 = arith.constant 0 : index
      %18 = vector.load %arg12[%c0, %c0_4] : memref<32x32xf32, #tpu.memory_space<vmem>>, vector<32x32xf32>
      tpu.vector_store %arg12[%c0, %c0_4], %17 {strides = array<i32>} : memref<32x32xf32, #tpu.memory_space<vmem>>, vector<32x32xf32>,
      %cst_5 = arith.constant 0.000000e+00 : f32
      %19 = vector.broadcast %cst_5 : f32 to vector<32x8xf32>
      %c0_6 = arith.constant 0 : index
      %c0_7 = arith.constant 0 : index
      %20 = vector.load %arg13[%c0_6, %c0_7] : memref<32x8xf32, #tpu.memory_space<vmem>>, vector<32x8xf32>
      tpu.vector_store %arg13[%c0_6, %c0_7], %19 {strides = array<i32>} : memref<32x8xf32, #tpu.memory_space<vmem>>, vector<32x8xf32>,
    } else {
    }
    %4 = arith.index_cast %arg1 : i32 to index
    %5 = memref.load %arg3[%4] : memref<3xi32, #tpu.memory_space<smem>>
    %6 = arith.cmpi sge, %5, %0 : i32
    %7 = arith.index_cast %arg1 : i32 to index
    %8 = memref.load %arg2[%7] : memref<3xi32, #tpu.memory_space<smem>>
    %c32_i32_1 = arith.constant 32 : i32
    %9 = arith.addi %0, %c32_i32_1 : i32
    %10 = arith.cmpi slt, %8, %9 : i32
    %11 = arith.andi %6, %10 : i1
    %12 = arith.extui %11 : i1 to i32
    %c0_i32_2 = arith.constant 0 : i32
    %13 = arith.cmpi ne, %12, %c0_i32_2 : i32
    scf.if %13 {
      %c0 = arith.constant 0 : index
      %c0_4 = arith.constant 0 : index
      %17 = vector.load %arg4[%c0, %c0_4] : memref<1x128xi32, #tpu.memory_space<vmem>>, vector<1x128xi32>
      %18 = vector.broadcast %0 : i32 to vector<1x128xi32>
      %19 = arith.subi %17, %18 : vector<1x128xi32>
      %20 = tpu.iota {dimensions = array<i32: 0>} : vector<32x128xi32>
      %21 = vector.broadcast %19 : vector<1x128xi32> to vector<32x128xi32>
      %22 = arith.cmpi eq, %20, %21 : vector<32x128xi32>
      %23 = arith.extui %22 : vector<32x128xi1> to vector<32x128xi32>
      %24 = arith.sitofp %23 : vector<32x128xi32> to vector<32x128xf32>
      %25 = arith.truncf %24 : vector<32x128xf32> to vector<32x128xbf16>
      %c0_5 = arith.constant 0 : index
      %c0_6 = arith.constant 0 : index
      %26 = vector.load %arg12[%c0_5, %c0_6] : memref<32x32xf32, #tpu.memory_space<vmem>>, vector<32x32xf32>
      %c0_7 = arith.constant 0 : index
      %c0_8 = arith.constant 0 : index
      %27 = vector.load %arg5[%c0_7, %c0_8] : memref<128x32xbf16, #tpu.memory_space<vmem>>, vector<128x32xbf16>
      %cst = arith.constant dense<0.000000e+00> : vector<32x32xf32>
      %28 = tpu.matmul %25, %27, %cst {dimension_numbers = #tpu.dot_dimension_numbers<[1], [0], [0], [1], [0, 0, 1, 1], [], []>} : vector<32x128xbf16>, vector<128x32xbf16>, vector<32x32xf32> -> vector<32x32xf32>
      %29 = arith.addf %26, %28 : vector<32x32xf32>
      %c0_9 = arith.constant 0 : index
      %c0_10 = arith.constant 0 : index
      %30 = vector.load %arg12[%c0_9, %c0_10] : memref<32x32xf32, #tpu.memory_space<vmem>>, vector<32x32xf32>
      tpu.vector_store %arg12[%c0_9, %c0_10], %29 {strides = array<i32>} : memref<32x32xf32, #tpu.memory_space<vmem>>, vector<32x32xf32>,
      %c0_11 = arith.constant 0 : index
      %c0_12 = arith.constant 0 : index
      %31 = vector.load %arg13[%c0_11, %c0_12] : memref<32x8xf32, #tpu.memory_space<vmem>>, vector<32x8xf32>
      %c0_13 = arith.constant 0 : index
      %c0_14 = arith.constant 0 : index
      %32 = vector.load %arg6[%c0_13, %c0_14] : memref<128x8xbf16, #tpu.memory_space<vmem>>, vector<128x8xbf16>
      %cst_15 = arith.constant dense<0.000000e+00> : vector<32x8xf32>
      %33 = tpu.matmul %25, %32, %cst_15 {dimension_numbers = #tpu.dot_dimension_numbers<[1], [0], [0], [1], [0, 0, 1, 1], [], []>} : vector<32x128xbf16>, vector<128x8xbf16>, vector<32x8xf32> -> vector<32x8xf32>
      %34 = arith.addf %31, %33 : vector<32x8xf32>
      %c0_16 = arith.constant 0 : index
      %c0_17 = arith.constant 0 : index
      %35 = vector.load %arg13[%c0_16, %c0_17] : memref<32x8xf32, #tpu.memory_space<vmem>>, vector<32x8xf32>
      tpu.vector_store %arg13[%c0_16, %c0_17], %34 {strides = array<i32>} : memref<32x8xf32, #tpu.memory_space<vmem>>, vector<32x8xf32>,
    } else {
    }
    %c2_i32 = arith.constant 2 : i32
    %14 = arith.cmpi eq, %arg1, %c2_i32 : i32
    %15 = arith.extui %14 : i1 to i32
    %c0_i32_3 = arith.constant 0 : i32
    %16 = arith.cmpi ne, %15, %c0_i32_3 : i32
    scf.if %16 {
      %c0 = arith.constant 0 : index
      %c0_4 = arith.constant 0 : index
      %17 = vector.load %arg12[%c0, %c0_4] : memref<32x32xf32, #tpu.memory_space<vmem>>, vector<32x32xf32>
      %c0_5 = arith.constant 0 : index
      %c0_6 = arith.constant 0 : index
      %18 = vector.load %arg13[%c0_5, %c0_6] : memref<32x8xf32, #tpu.memory_space<vmem>>, vector<32x8xf32>
      %19 = vector.extract_strided_slice %18 {offsets = [0, 0], sizes = [32, 2], strides = [1, 1]} : vector<32x8xf32> to vector<32x2xf32>
      %20 = vector.extract_strided_slice %18 {offsets = [0, 2], sizes = [32, 2], strides = [1, 1]} : vector<32x8xf32> to vector<32x2xf32>
      %21 = vector.extract_strided_slice %18 {offsets = [0, 4], sizes = [32, 1], strides = [1, 1]} : vector<32x8xf32> to vector<32x1xf32>
      %cst = arith.constant 2.560000e+02 : f32
      %22 = vector.broadcast %cst : f32 to vector<32x2xf32>
      %23 = arith.mulf %22, %19 : vector<32x2xf32>
      %24 = arith.addf %23, %20 : vector<32x2xf32>
      %cst_7 = arith.constant 1.000000e+00 : f32
      %25 = vector.broadcast %cst_7 : f32 to vector<32x1xf32>
      %26 = arith.maximumf %21, %25 : vector<32x1xf32>
      %27 = vector.broadcast %26 : vector<32x1xf32> to vector<32x2xf32>
      %28 = arith.divf %24, %27 : vector<32x2xf32>
      %c0_8 = arith.constant 0 : index
      %c0_9 = arith.constant 0 : index
      %29 = vector.load %arg7[%c0_8, %c0_9] : memref<32x32xf32, #tpu.memory_space<vmem>>, vector<32x32xf32>
      %cst_10 = arith.constant dense<0.000000e+00> : vector<32x32xf32>
      %30 = tpu.matmul %17, %29, %cst_10 {dimension_numbers = #tpu.dot_dimension_numbers<[1], [0], [0], [1], [0, 0, 1, 1], [], []>} : vector<32x32xf32>, vector<32x32xf32>, vector<32x32xf32> -> vector<32x32xf32>
      %c0_11 = arith.constant 0 : index
      %c0_12 = arith.constant 0 : index
      %31 = vector.load %arg8[%c0_11, %c0_12] : memref<1x32xf32, #tpu.memory_space<vmem>>, vector<1x32xf32>
      %32 = vector.broadcast %31 : vector<1x32xf32> to vector<32x32xf32>
      %33 = arith.addf %30, %32 : vector<32x32xf32>
      %cst_13 = arith.constant 0.000000e+00 : f32
      %34 = vector.broadcast %cst_13 : f32 to vector<32x32xf32>
      %35 = arith.maximumf %33, %34 : vector<32x32xf32>
      %c0_14 = arith.constant 0 : index
      %c0_15 = arith.constant 0 : index
      %36 = vector.load %arg9[%c0_14, %c0_15] : memref<32x128xf32, #tpu.memory_space<vmem>>, vector<32x128xf32>
      %cst_16 = arith.constant dense<0.000000e+00> : vector<32x128xf32>
      %37 = tpu.matmul %35, %36, %cst_16 {dimension_numbers = #tpu.dot_dimension_numbers<[1], [0], [0], [1], [0, 0, 1, 1], [], []>} : vector<32x32xf32>, vector<32x128xf32>, vector<32x128xf32> -> vector<32x128xf32>
      %c0_17 = arith.constant 0 : index
      %c0_18 = arith.constant 0 : index
      %38 = vector.load %arg10[%c0_17, %c0_18] : memref<1x128xf32, #tpu.memory_space<vmem>>, vector<1x128xf32>
      %39 = vector.broadcast %38 : vector<1x128xf32> to vector<32x128xf32>
      %40 = arith.addf %37, %39 : vector<32x128xf32>
      %c0_19 = arith.constant 0 : index
      %c0_20 = arith.constant 0 : index
      %41 = vector.load %arg11[%c0_19, %c0_20] : memref<32x128xf32, #tpu.memory_space<vmem>>, vector<32x128xf32>
      tpu.vector_store %arg11[%c0_19, %c0_20], %40 {strides = array<i32>} : memref<32x128xf32, #tpu.memory_space<vmem>>, vector<32x128xf32>,
      %c0_21 = arith.constant 0 : index
      %c32 = arith.constant 32 : index
      %42 = vector.load %arg11[%c0_21, %c32] : memref<32x128xf32, #tpu.memory_space<vmem>>, vector<32x2xf32>
      tpu.vector_store %arg11[%c0_21, %c32], %28 {strides = array<i32>} : memref<32x128xf32, #tpu.memory_space<vmem>>, vector<32x2xf32>,
      %c0_22 = arith.constant 0 : index
      %c34 = arith.constant 34 : index
      %43 = vector.load %arg11[%c0_22, %c34] : memref<32x128xf32, #tpu.memory_space<vmem>>, vector<32x1xf32>
      tpu.vector_store %arg11[%c0_22, %c34], %21 {strides = array<i32>} : memref<32x128xf32, #tpu.memory_space<vmem>>, vector<32x1xf32>,
    } else {
    }
    return
  }
  func.func @transform_0(%arg0: i32, %arg1: i32, %arg2: memref<3xi32, #tpu.memory_space<smem>>, %arg3: memref<3xi32, #tpu.memory_space<smem>>) -> (i32, i32) {
    %c0_i32 = arith.constant 0 : i32
    %c0_i32_0 = arith.constant 0 : i32
    return %c0_i32, %arg1 : i32, i32
  }
  func.func @transform_1(%arg0: i32, %arg1: i32, %arg2: memref<3xi32, #tpu.memory_space<smem>>, %arg3: memref<3xi32, #tpu.memory_space<smem>>) -> (i32, i32) {
    %c0_i32 = arith.constant 0 : i32
    %c0_i32_0 = arith.constant 0 : i32
    return %arg1, %c0_i32 : i32, i32
  }
  func.func @transform_2(%arg0: i32, %arg1: i32, %arg2: memref<3xi32, #tpu.memory_space<smem>>, %arg3: memref<3xi32, #tpu.memory_space<smem>>) -> (i32, i32) {
    %c0_i32 = arith.constant 0 : i32
    %c0_i32_0 = arith.constant 0 : i32
    return %arg1, %c0_i32 : i32, i32
  }
  func.func @transform_3(%arg0: i32, %arg1: i32, %arg2: memref<3xi32, #tpu.memory_space<smem>>, %arg3: memref<3xi32, #tpu.memory_space<smem>>) -> (i32, i32) {
    %c0_i32 = arith.constant 0 : i32
    %c0_i32_0 = arith.constant 0 : i32
    %c0_i32_1 = arith.constant 0 : i32
    return %c0_i32, %c0_i32_0 : i32, i32
  }
  func.func @transform_4(%arg0: i32, %arg1: i32, %arg2: memref<3xi32, #tpu.memory_space<smem>>, %arg3: memref<3xi32, #tpu.memory_space<smem>>) -> (i32, i32) {
    %c0_i32 = arith.constant 0 : i32
    %c0_i32_0 = arith.constant 0 : i32
    %c0_i32_1 = arith.constant 0 : i32
    return %c0_i32, %c0_i32_0 : i32, i32
  }
  func.func @transform_5(%arg0: i32, %arg1: i32, %arg2: memref<3xi32, #tpu.memory_space<smem>>, %arg3: memref<3xi32, #tpu.memory_space<smem>>) -> (i32, i32) {
    %c0_i32 = arith.constant 0 : i32
    %c0_i32_0 = arith.constant 0 : i32
    %c0_i32_1 = arith.constant 0 : i32
    return %c0_i32, %c0_i32_0 : i32, i32
  }
  func.func @transform_6(%arg0: i32, %arg1: i32, %arg2: memref<3xi32, #tpu.memory_space<smem>>, %arg3: memref<3xi32, #tpu.memory_space<smem>>) -> (i32, i32) {
    %c0_i32 = arith.constant 0 : i32
    %c0_i32_0 = arith.constant 0 : i32
    %c0_i32_1 = arith.constant 0 : i32
    return %c0_i32, %c0_i32_0 : i32, i32
  }
  func.func @transform_7(%arg0: i32, %arg1: i32, %arg2: memref<3xi32, #tpu.memory_space<smem>>, %arg3: memref<3xi32, #tpu.memory_space<smem>>) -> (i32, i32) {
    %c0_i32 = arith.constant 0 : i32
    %c0_i32_0 = arith.constant 0 : i32
    return %arg0, %c0_i32 : i32, i32
  }
}

</mosaic_0001>

<llo_original>
// kernel: _agg_pallas.1
$region0: #{_agg_pallas.1}
  #allocation0 [shape = 'u32[]', space=smem, size = 0x4, offset = 0x4, fixed_abs, tag = 'smem constant byte address 0x4 - core index']
  #allocation1 [shape = 'u32[144,128]{1,0:T(1,128)}', space=vmem, size = 0x12000, scoped, tag = 'internal scratch']
  #allocation2 [shape = 'f32[32,32]{1,0:T(8,128)}', space=vmem, size = 0x4000, scoped, tag = 'scratch operand']
  #allocation3 [shape = 'f32[32,8]{1,0:T(8,128)}', space=vmem, size = 0x4000, scoped, tag = 'scratch operand']
  #allocation4 [shape = 's32[1]{0}', space=sflag, size = 0x4, scoped, tag = 'scoped memory for _agg_pallas.1']
  #allocation5 [shape = 'u8[512]{0}', space=smem, size = 0x200, scoped, tag = 'prefetched SMEM operand 0']
  #allocation6 [shape = 'u8[512]{0}', space=smem, size = 0x200, scoped, tag = 'prefetched SMEM operand 1']
  %s0 = inlined_call_operand.vmem [shape: s32[3], index: 0, kind: input, shape index: {}]
  %s1 = inlined_call_operand.vmem [shape: s32[3], index: 1, kind: input, shape index: {}]
  %s2 = inlined_call_operand.vmem [shape: s32[1,384], index: 2, kind: input, shape index: {}]
  %s3 = inlined_call_operand.vmem [shape: bf16[384,32], index: 3, kind: input, shape index: {}]
  %s4 = inlined_call_operand.vmem [shape: bf16[384,8], index: 4, kind: input, shape index: {}]
  %s5 = inlined_call_operand.vmem [shape: f32[32,32], index: 5, kind: input, shape index: {}]
  %s6 = inlined_call_operand.vmem [shape: f32[1,32], index: 6, kind: input, shape index: {}]
  %s7 = inlined_call_operand.vmem [shape: f32[32,128], index: 7, kind: input, shape index: {}]
  %s8 = inlined_call_operand.vmem [shape: f32[1,128], index: 8, kind: input, shape index: {}]
  %s9 = inlined_call_operand.vmem [shape: f32[64,128], index: 9, kind: output, shape index: {}]
  %s10 = sld [smem:[#allocation0]]
  $region73: #{_agg_pallas.1} parent=0
    _
  %s12 = ssub.s32 1, %s10
  %s13 = scalar_select 0, %s12, %s10
  %s14 = sshll.u32 %s0, 4
  %s15 = int_to_ptr.vmem [resolvable:$true] %s14
  %17 = dma.vmem_to_smem %s15, 16, [#allocation5], [#allocation4]
  %s18 = sshll.u32 %s1, 4
  %s19 = int_to_ptr.vmem [resolvable:$true] %s18
  %21 = dma.vmem_to_smem %s19, 16, [#allocation6], [#allocation4]
  %22 = dma.done [#allocation4], 32
  %23 = sfence
  loop: start=0, step=1, limit=8
  $region2: #{_agg_pallas.1} parent=0 // loop_pre_header
    _
  $region3: #{_agg_pallas.1} parent=0 // loop_header
    %s25 = sphi 0, %s29
    %p26 = scmp.ge.s32.totalorder %s25, 8
    %s32 = sphi 0, %s44
    %s33 = sphi 0, %s40
    %s34 = sphi 0, %s32
    %s35 = sphi 0, %s33
    %s36 = sphi 0, %s34
    %s37 = sphi 0, %s35
    %s47 = sphi 0, %s49
    %s50 = sphi 0, %s47
    %s51 = sphi 0, %s50
    %s67 = sphi 0, %s51
    %s73 = sphi 0, %s75
    %s76 = sphi 0, %s73
    %s77 = sphi 0, %s76
    %s93 = sphi 0, %s77
    %s99 = sphi 0, %s101
    %s102 = sphi 0, %s99
    %s103 = sphi 0, %s102
    %s119 = sphi 0, %s103
    %s123 = sphi 0, %s123
    %s125 = sphi 0, %s123
    %s126 = sphi 0, %s125
    %s140 = sphi 0, %s126
    %s144 = sphi 0, %s144
    %s146 = sphi 0, %s144
    %s147 = sphi 0, %s146
    %s161 = sphi 0, %s147
    %s165 = sphi 0, %s165
    %s167 = sphi 0, %s165
    %s168 = sphi 0, %s167
    %s182 = sphi 0, %s168
    %s186 = sphi 0, %s186
    %s188 = sphi 0, %s186
    %s189 = sphi 0, %s188
    %s203 = sphi 0, %s189
    %s209 = sphi 0, %s211
    %s212 = sphi 0, %s209
    %s213 = sphi 0, %s212
    %s229 = sphi 0, %s213
  $region4: #{_agg_pallas.1} parent=0 // loop_header_branch
    %28 = sbr.rel (%p26) target = $region8
  $region5: #{_agg_pallas.1} parent=0 // loop_body
    %s30 = ssub.s32 %s25, 1
    %s31 = ssub.s32 %s25, 2
    %s38 = sadd.s32 1, %s33
    %p39 = scmp.ge.s32.totalorder %s38, 3
    %s40 = scalar_select %p39, 0, %s38
    %s41 = sadd.s32 1, %s32
    %s42 = scalar_select %p39, %s41, %s32
    %p43 = scmp.ge.s32.totalorder %s42, 2
    %s44 = scalar_select %p43, 0, %s42
    %s45 = ssub.s32 %s33, %s40
    %p46 = scmp.eq.s32.totalorder %s45, 0
    %s48 = sadd.s32 %s47, 1
    %s49 = scalar_select %p46, %s47, %s48
    %p52 = pneg %p46
    %p53 = scmp.eq.s32.totalorder %s25, 5
    %p54 = por %p52, %p53
    %p55 = scmp.ne.s32.totalorder %s47, %s50
    %p56 = scmp.eq.s32.totalorder %s25, 0
    %p57 = por %p55, %p56
    %p58 = scmp.ne.s32.totalorder %s47, %s50
    %p59 = scmp.eq.s32.totalorder %s30, 5
    %p60 = por %p58, %p59
    %p61 = scmp.ne.s32.totalorder %s50, %s51
    %p62 = scmp.eq.s32.totalorder %s30, 0
    %p63 = por %p61, %p62
    %p64 = scmp.ne.s32.totalorder %s50, %s51
    %p65 = scmp.eq.s32.totalorder %s31, 5
    %p66 = por %p64, %p65
    %p68 = scmp.ne.s32.totalorder %s51, %s67
    %p69 = scmp.eq.s32.totalorder %s31, 0
    %p70 = por %p68, %p69
    %s71 = ssub.s32 %s33, %s40
    %p72 = scmp.eq.s32.totalorder %s71, 0
    %s74 = sadd.s32 %s73, 1
    %s75 = scalar_select %p72, %s73, %s74
    %p78 = pneg %p72
    %p79 = scmp.eq.s32.totalorder %s25, 5
    %p80 = por %p78, %p79
    %p81 = scmp.ne.s32.totalorder %s73, %s76
    %p82 = scmp.eq.s32.totalorder %s25, 0
    %p83 = por %p81, %p82
    %p84 = scmp.ne.s32.totalorder %s73, %s76
    %p85 = scmp.eq.s32.totalorder %s30, 5
    %p86 = por %p84, %p85
    %p87 = scmp.ne.s32.totalorder %s76, %s77
    %p88 = scmp.eq.s32.totalorder %s30, 0
    %p89 = por %p87, %p88
    %p90 = scmp.ne.s32.totalorder %s76, %s77
    %p91 = scmp.eq.s32.totalorder %s31, 5
    %p92 = por %p90, %p91
    %p94 = scmp.ne.s32.totalorder %s77, %s93
    %p95 = scmp.eq.s32.totalorder %s31, 0
    %p96 = por %p94, %p95
    %s97 = ssub.s32 %s33, %s40
    %p98 = scmp.eq.s32.totalorder %s97, 0
    %s100 = sadd.s32 %s99, 1
    %s101 = scalar_select %p98, %s99, %s100
    %p104 = pneg %p98
    %p105 = scmp.eq.s32.totalorder %s25, 5
    %p106 = por %p104, %p105
    %p107 = scmp.ne.s32.totalorder %s99, %s102
    %p108 = scmp.eq.s32.totalorder %s25, 0
    %p109 = por %p107, %p108
    %p110 = scmp.ne.s32.totalorder %s99, %s102
    %p111 = scmp.eq.s32.totalorder %s30, 5
    %p112 = por %p110, %p111
    %p113 = scmp.ne.s32.totalorder %s102, %s103
    %p114 = scmp.eq.s32.totalorder %s30, 0
    %p115 = por %p113, %p114
    %p116 = scmp.ne.s32.totalorder %s102, %s103
    %p117 = scmp.eq.s32.totalorder %s31, 5
    %p118 = por %p116, %p117
    %p120 = scmp.ne.s32.totalorder %s103, %s119
    %p121 = scmp.eq.s32.totalorder %s31, 0
    %p122 = por %p120, %p121
    %s124 = sadd.s32 %s123, 1
    %p127 = scmp.eq.s32.totalorder %s25, 5
    %p128 = scmp.ne.s32.totalorder %s123, %s125
    %p129 = scmp.eq.s32.totalorder %s25, 0
    %p130 = por %p128, %p129
    %p131 = scmp.ne.s32.totalorder %s123, %s125
    %p132 = scmp.eq.s32.totalorder %s30, 5
    %p133 = por %p131, %p132
    %p134 = scmp.ne.s32.totalorder %s125, %s126
    %p135 = scmp.eq.s32.totalorder %s30, 0
    %p136 = por %p134, %p135
    %p137 = scmp.ne.s32.totalorder %s125, %s126
    %p138 = scmp.eq.s32.totalorder %s31, 5
    %p139 = por %p137, %p138
    %p141 = scmp.ne.s32.totalorder %s126, %s140
    %p142 = scmp.eq.s32.totalorder %s31, 0
    %p143 = por %p141, %p142
    %s145 = sadd.s32 %s144, 1
    %p148 = scmp.eq.s32.totalorder %s25, 5
    %p149 = scmp.ne.s32.totalorder %s144, %s146
    %p150 = scmp.eq.s32.totalorder %s25, 0
    %p151 = por %p149, %p150
    %p152 = scmp.ne.s32.totalorder %s144, %s146
    %p153 = scmp.eq.s32.totalorder %s30, 5
    %p154 = por %p152, %p153
    %p155 = scmp.ne.s32.totalorder %s146, %s147
    %p156 = scmp.eq.s32.totalorder %s30, 0
    %p157 = por %p155, %p156
    %p158 = scmp.ne.s32.totalorder %s146, %s147
    %p159 = scmp.eq.s32.totalorder %s31, 5
    %p160 = por %p158, %p159
    %p162 = scmp.ne.s32.totalorder %s147, %s161
    %p163 = scmp.eq.s32.totalorder %s31, 0
    %p164 = por %p162, %p163
    %s166 = sadd.s32 %s165, 1
    %p169 = scmp.eq.s32.totalorder %s25, 5
    %p170 = scmp.ne.s32.totalorder %s165, %s167
    %p171 = scmp.eq.s32.totalorder %s25, 0
    %p172 = por %p170, %p171
    %p173 = scmp.ne.s32.totalorder %s165, %s167
    %p174 = scmp.eq.s32.totalorder %s30, 5
    %p175 = por %p173, %p174
    %p176 = scmp.ne.s32.totalorder %s167, %s168
    %p177 = scmp.eq.s32.totalorder %s30, 0
    %p178 = por %p176, %p177
    %p179 = scmp.ne.s32.totalorder %s167, %s168
    %p180 = scmp.eq.s32.totalorder %s31, 5
    %p181 = por %p179, %p180
    %p183 = scmp.ne.s32.totalorder %s168, %s182
    %p184 = scmp.eq.s32.totalorder %s31, 0
    %p185 = por %p183, %p184
    %s187 = sadd.s32 %s186, 1
    %p190 = scmp.eq.s32.totalorder %s25, 5
    %p191 = scmp.ne.s32.totalorder %s186, %s188
    %p192 = scmp.eq.s32.totalorder %s25, 0
    %p193 = por %p191, %p192
    %p194 = scmp.ne.s32.totalorder %s186, %s188
    %p195 = scmp.eq.s32.totalorder %s30, 5
    %p196 = por %p194, %p195
    %p197 = scmp.ne.s32.totalorder %s188, %s189
    %p198 = scmp.eq.s32.totalorder %s30, 0
    %p199 = por %p197, %p198
    %p200 = scmp.ne.s32.totalorder %s188, %s189
    %p201 = scmp.eq.s32.totalorder %s31, 5
    %p202 = por %p200, %p201
    %p204 = scmp.ne.s32.totalorder %s189, %s203
    %p205 = scmp.eq.s32.totalorder %s31, 0
    %p206 = por %p204, %p205
    %s207 = ssub.s32 %s32, %s44
    %p208 = scmp.eq.s32.totalorder %s207, 0
    %s210 = sadd.s32 %s209, 1
    %s211 = scalar_select %p208, %s209, %s210
    %p214 = pneg %p208
    %p215 = scmp.eq.s32.totalorder %s25, 5
    %p216 = por %p214, %p215
    %p217 = scmp.ne.s32.totalorder %s209, %s212
    %p218 = scmp.eq.s32.totalorder %s25, 0
    %p219 = por %p217, %p218
    %p220 = scmp.ne.s32.totalorder %s209, %s212
    %p221 = scmp.eq.s32.totalorder %s30, 5
    %p222 = por %p220, %p221
    %p223 = scmp.ne.s32.totalorder %s212, %s213
    %p224 = scmp.eq.s32.totalorder %s30, 0
    %p225 = por %p223, %p224
    %p226 = scmp.ne.s32.totalorder %s212, %s213
    %p227 = scmp.eq.s32.totalorder %s31, 5
    %p228 = por %p226, %p227
    %p230 = scmp.ne.s32.totalorder %s213, %s229
    %p231 = scmp.eq.s32.totalorder %s31, 0
    %p232 = por %p230, %p231
    %p233 = scmp.le.s32.totalorder 1, %s25
    %p234 = scmp.lt.s32.totalorder %s25, 7
    %p235 = pnand %p233, %p234
    %p236 = pneg %p235
    // Predicated region
    $region9: #{_agg_pallas.1} parent=5 // pred_check
      _
    $region10: #{_agg_pallas.1} parent=5 // pred_check_branch
      %238 = sbr.rel (%p235) target = $region12
    $region11: #{_agg_pallas.1} parent=5 // pred_region
      %s239 = ssub.s32 %s25, 1
      // Predicated region
      $region13: #{_agg_pallas.1} parent=11 // pred_check
        %p240 = pneg %p136
      $region14: #{_agg_pallas.1} parent=11 // pred_check_branch
        %242 = sbr.rel (%p240) target = $region16
      $region15: #{_agg_pallas.1} parent=11 // pred_region
        _
      $region16: #{_agg_pallas.1} parent=11 // pred_fallthru
        _
      // Predicated region
      $region17: #{_agg_pallas.1} parent=11 // pred_check
        %p243 = pneg %p157
      $region18: #{_agg_pallas.1} parent=11 // pred_check_branch
        %245 = sbr.rel (%p243) target = $region20
      $region19: #{_agg_pallas.1} parent=11 // pred_region
        _
      $region20: #{_agg_pallas.1} parent=11 // pred_fallthru
        _
      // Predicated region
      $region21: #{_agg_pallas.1} parent=11 // pred_check
        %p246 = pneg %p178
      $region22: #{_agg_pallas.1} parent=11 // pred_check_branch
        %248 = sbr.rel (%p246) target = $region24
      $region23: #{_agg_pallas.1} parent=11 // pred_region
        _
      $region24: #{_agg_pallas.1} parent=11 // pred_fallthru
        _
      // Predicated region
      $region25: #{_agg_pallas.1} parent=11 // pred_check
        %p249 = pneg %p199
      $region26: #{_agg_pallas.1} parent=11 // pred_check_branch
        %251 = sbr.rel (%p249) target = $region28
      $region27: #{_agg_pallas.1} parent=11 // pred_region
        _
      $region28: #{_agg_pallas.1} parent=11 // pred_fallthru
        _
    $region12: #{_agg_pallas.1} parent=5 // pred_fallthru
      _
    %p252 = scmp.lt.s32.totalorder %s25, 6
    // Predicated region
    $region29: #{_agg_pallas.1} parent=5 // pred_check
      %p253 = pneg %p252
    $region30: #{_agg_pallas.1} parent=5 // pred_check_branch
      %255 = sbr.rel (%p253) target = $region32
    $region31: #{_agg_pallas.1} parent=5 // pred_region
      // Predicated region
      $region33: #{_agg_pallas.1} parent=31 // pred_check
        %p256 = pneg %p57
      $region34: #{_agg_pallas.1} parent=31 // pred_check_branch
        %258 = sbr.rel (%p256) target = $region36
      $region35: #{_agg_pallas.1} parent=31 // pred_region
        %p259 = scmp.lt.s32.totalorder %s33, 2
        %s260 = scalar_select %p259, %s33, 2
        %s261 = scalar_lea.vmem %s2, %s260
      $region36: #{_agg_pallas.1} parent=31 // pred_fallthru
        _
      // Predicated region
      $region37: #{_agg_pallas.1} parent=31 // pred_check
        %p262 = pneg %p83
      $region38: #{_agg_pallas.1} parent=31 // pred_check_branch
        %264 = sbr.rel (%p262) target = $region40
      $region39: #{_agg_pallas.1} parent=31 // pred_region
        %s265 = smul.u32 16, %s33
        %p266 = scmp.lt.s32.totalorder %s265, 47
        %s267 = scalar_select %p266, %s265, 47
        %s268 = smul.addr %s267, 4
        %s269 = scalar_lea.vmem %s3, %s268
        %s270 = smul.u32 16, %s33
      $region40: #{_agg_pallas.1} parent=31 // pred_fallthru
        _
      // Predicated region
      $region41: #{_agg_pallas.1} parent=31 // pred_check
        %p271 = pneg %p109
      $region42: #{_agg_pallas.1} parent=31 // pred_check_branch
        %273 = sbr.rel (%p271) target = $region44
      $region43: #{_agg_pallas.1} parent=31 // pred_region
        %s274 = smul.u32 16, %s33
        %p275 = scmp.lt.s32.totalorder %s274, 47
        %s276 = scalar_select %p275, %s274, 47
        %s277 = smul.addr %s276, 4
        %s278 = scalar_lea.vmem %s4, %s277
        %s279 = smul.u32 16, %s33
      $region44: #{_agg_pallas.1} parent=31 // pred_fallthru
        _
    $region32: #{_agg_pallas.1} parent=5 // pred_fallthru
      _
    %p280 = scmp.le.s32.totalorder 1, %s25
    %p281 = scmp.lt.s32.totalorder %s25, 7
    %p282 = pnand %p280, %p281
    %p283 = pneg %p282
    // Predicated region
    $region45: #{_agg_pallas.1} parent=5 // pred_check
      _
    $region46: #{_agg_pallas.1} parent=5 // pred_check_branch
      %285 = sbr.rel (%p282) target = $region48
    $region47: #{_agg_pallas.1} parent=5 // pred_region
      %s286 = ssub.s32 %s25, 1
      %p287 = scmp.lt.s32.totalorder %s35, 2
      %s288 = scalar_select %p287, %s35, 2
      %s289 = scalar_lea.vmem %s2, %s288
      %p290 = pneg %p63
      %p291 = pneg %p60
      %s292 = smul.u32 16, %s35
      %p293 = scmp.lt.s32.totalorder %s292, 47
      %s294 = scalar_select %p293, %s292, 47
      %s295 = smul.addr %s294, 4
      %s296 = scalar_lea.vmem %s3, %s295
      %p297 = pneg %p89
      %p298 = pneg %p86
      %s299 = smul.u32 16, %s35
      %p300 = scmp.lt.s32.totalorder %s299, 47
      %s301 = scalar_select %p300, %s299, 47
      %s302 = smul.addr %s301, 4
      %s303 = scalar_lea.vmem %s4, %s302
      %p304 = pneg %p115
      %p305 = pneg %p112
      %p306 = pneg %p136
      %p307 = pneg %p133
      %p308 = pneg %p157
      %p309 = pneg %p154
      %p310 = pneg %p178
      %p311 = pneg %p175
      %p312 = pneg %p199
      %p313 = pneg %p196
      %p314 = pneg %p225
      %p315 = pneg %p222
      %s316 = smul.u32 4, %s34
      %p317 = scmp.lt.s32.totalorder %s316, 7
      %s318 = scalar_select %p317, %s316, 7
      %s319 = smul.addr %s318, 8
      %s320 = scalar_lea.vmem %s9, %s319
      %p321 = scmp.lt.s32.totalorder %s35, 2
      %s322 = scalar_select %p321, %s35, 2
      %s323 = scalar_lea.vmem %s2, %s322
      %s324 = smul.u32 16, %s35
      %p325 = scmp.lt.s32.totalorder %s324, 47
      %s326 = scalar_select %p325, %s324, 47
      %s327 = smul.addr %s326, 4
      %s328 = scalar_lea.vmem %s3, %s327
      %s329 = smul.u32 16, %s35
      %s330 = smul.u32 16, %s35
      %p331 = scmp.lt.s32.totalorder %s330, 47
      %s332 = scalar_select %p331, %s330, 47
      %s333 = smul.addr %s332, 4
      %s334 = scalar_lea.vmem %s4, %s333
      %s335 = smul.u32 16, %s35
      %s336 = smul.u32 4, %s34
      %p337 = scmp.lt.s32.totalorder %s336, 7
      %s338 = scalar_select %p337, %s336, 7
      %s339 = smul.addr %s338, 8
      %s340 = scalar_lea.vmem %s9, %s339
      %s341 = smul.u32 4, %s34
      %s343 = smul.u32 %s34, 32
      %p344 = scmp.eq.s32.totalorder %s35, 0
      // Predicated region
      $region49: #{_agg_pallas.1} parent=47 // pred_check
        %p345 = pneg %p344
      $region50: #{_agg_pallas.1} parent=47 // pred_check_branch
        %347 = sbr.rel (%p345) target = $region52
      $region51: #{_agg_pallas.1} parent=47 // pred_region
        %vm348 = vcmask 261120
        %349 = vst.msk [vmem:[#allocation2] sm:$0xff] %vm348, 0.0
        %350 = vst.msk [vmem:[#allocation2 + $0x8] sm:$0xff] %vm348, 0.0
        %351 = vst.msk [vmem:[#allocation2 + $0x10] sm:$0xff] %vm348, 0.0
        %352 = vst.msk [vmem:[#allocation2 + $0x18] sm:$0xff] %vm348, 0.0
        %vm353 = vcmask 64512
        %354 = vst.msk [vmem:[#allocation3] sm:$0xff] %vm353, 0.0
        %355 = vst.msk [vmem:[#allocation3 + $0x8] sm:$0xff] %vm353, 0.0
        %356 = vst.msk [vmem:[#allocation3 + $0x10] sm:$0xff] %vm353, 0.0
        %357 = vst.msk [vmem:[#allocation3 + $0x18] sm:$0xff] %vm353, 0.0
      $region52: #{_agg_pallas.1} parent=47 // pred_fallthru
        _
      %s358 = sld [smem:[#allocation6 + %s35]]
      %p359 = scmp.ge.s32.totalorder %s358, %s343
      %s360 = sld [smem:[#allocation5 + %s35]]
      %s361 = sadd.s32 %s343, 32
      %p362 = scmp.lt.s32.totalorder %s360, %s361
      %p363 = pnand %p359, %p362
      %p364 = pneg %p363
      // Predicated region
      $region53: #{_agg_pallas.1} parent=47 // pred_check
        _
      $region54: #{_agg_pallas.1} parent=47 // pred_check_branch
        %366 = sbr.rel (%p363) target = $region56
      $region55: #{_agg_pallas.1} parent=47 // pred_region
        %v367 = vld [vmem:[%s323] sm:$0x1]
        %v368 = vstv %s343
        %v369 = vsub.s32 %v367, %v368
        %v370 = vlaneseq
        %v371 = vshrl.u32 %v370, 7
        %v372 = vadd.s32 %v371, 8
        %v373 = vadd.s32 %v371, 16
        %v374 = vadd.s32 %v371, 24
        %v375 = vlaneseq
        %v376 = vshrl.u32 %v375, 7
        %v377 = vsub.s32 0, %v376
        %v378 = vrot.slane %v369, %v377
        %vm379 = vcmp.eq.s32.totalorder %v371, %v378
        %vm380 = vcmp.eq.s32.totalorder %v372, %v378
        %vm381 = vcmp.eq.s32.totalorder %v373, %v378
        %vm382 = vcmp.eq.s32.totalorder %v374, %v378
        %v383 = vsel %vm379, 1, 0
        %v384 = vsel %vm380, 1, 0
        %v385 = vsel %vm381, 1, 0
        %v386 = vsel %vm382, 1, 0
        %v387 = vcvt.s32.f32 %v383
        %v388 = vcvt.s32.f32 %v384
        %v389 = vcvt.s32.f32 %v385
        %v390 = vcvt.s32.f32 %v386
        %v391 = vpack.c.bf16 %v388, %v387
        %v392 = vpack.c.bf16 %v390, %v389
        %v393 = vld [vmem:[#allocation2] sm:$0xff]
        %v394 = vld [vmem:[#allocation2 + $0x8] sm:$0xff]
        %v395 = vld [vmem:[#allocation2 + $0x10] sm:$0xff]
        %v396 = vld [vmem:[#allocation2 + $0x18] sm:$0xff]
        %v397 = vld [vmem:[%s328] sm:$0xf]
        %v398 = vld [vmem:[%s328 + $0x4] sm:$0xf]
        %v399 = vld [vmem:[%s328 + $0x8] sm:$0xf]
        %v400 = vld [vmem:[%s328 + $0xc] sm:$0xf]
        %v401 = vld [vmem:[%s328 + $0x10] sm:$0xf]
        %v402 = vld [vmem:[%s328 + $0x14] sm:$0xf]
        %v403 = vld [vmem:[%s328 + $0x18] sm:$0xf]
        %v404 = vld [vmem:[%s328 + $0x1c] sm:$0xf]
        %v405 = vld [vmem:[%s328 + $0x20] sm:$0xf]
        %v406 = vld [vmem:[%s328 + $0x24] sm:$0xf]
        %v407 = vld [vmem:[%s328 + $0x28] sm:$0xf]
        %v408 = vld [vmem:[%s328 + $0x2c] sm:$0xf]
        %v409 = vld [vmem:[%s328 + $0x30] sm:$0xf]
        %v410 = vld [vmem:[%s328 + $0x34] sm:$0xf]
        %v411 = vld [vmem:[%s328 + $0x38] sm:$0xf]
        %v412 = vld [vmem:[%s328 + $0x3c] sm:$0xf]
        %v429 = vunpack.c.l.b16 %v397
        %v430 = vunpack.c.l.b16 %v398
        %v431 = vunpack.c.l.b16 %v399
        %v432 = vunpack.c.l.b16 %v400
        %v433 = vunpack.c.l.b16 %v401
        %v434 = vunpack.c.l.b16 %v402
        %v435 = vunpack.c.l.b16 %v403
        %v436 = vunpack.c.l.b16 %v404
        %v437 = vunpack.c.l.b16 %v405
        %v438 = vunpack.c.l.b16 %v406
        %v439 = vunpack.c.l.b16 %v407
        %v440 = vunpack.c.l.b16 %v408
        %v441 = vunpack.c.l.b16 %v409
        %v442 = vunpack.c.l.b16 %v410
        %v443 = vunpack.c.l.b16 %v411
        %v444 = vunpack.c.l.b16 %v412
        %v445 = vpack.c.b16 %v430, %v429
        %v446 = vpack.c.b16 %v432, %v431
        %v447 = vpack.c.b16 %v434, %v433
        %v448 = vpack.c.b16 %v436, %v435
        %v449 = vpack.c.b16 %v438, %v437
        %v450 = vpack.c.b16 %v440, %v439
        %v451 = vpack.c.b16 %v442, %v441
        %v452 = vpack.c.b16 %v444, %v443
        %461 = vmatprep.subr.bf16.mxu0 0
        %462 = vmatpush1.bf16.msra.mxu0 %v445
        %463 = vmatprep.subr.bf16.mxu0 0
        %464 = vmatpush1.bf16.msra.mxu0 %v446
        %465 = vmatprep.subr.bf16.mxu0 0
        %466 = vmatpush1.bf16.msra.mxu0 %v447
        %467 = vmatprep.subr.bf16.mxu0 0
        %468 = vmatpush1.bf16.msra.mxu0 %v448
        %469 = vmatprep.subr.bf16.mxu0 0
        %470 = vmatpush1.bf16.msra.mxu0 %v449
        %471 = vmatprep.subr.bf16.mxu0 0
        %472 = vmatpush1.bf16.msra.mxu0 %v450
        %473 = vmatprep.subr.bf16.mxu0 0
        %474 = vmatpush1.bf16.msra.mxu0 %v451
        %475 = vmatprep.subr.bf16.mxu0 0
        %476 = vmatpush1.bf16.msra.mxu0 %v452
        %477 = vmatprep.subr.bf16.mxu0 0
        %478 = vmatpush1.bf16.msra.mxu0 0
        %479 = vmatprep.subr.bf16.mxu0 0
        %480 = vmatpush1.bf16.msra.mxu0 0
        %481 = vmatprep.subr.bf16.mxu0 0
        %482 = vmatpush1.bf16.msra.mxu0 0
        %483 = vmatprep.subr.bf16.mxu0 0
        %484 = vmatpush1.bf16.msra.mxu0 0
        %485 = vmatprep.subr.bf16.mxu0 0
        %486 = vmatpush1.bf16.msra.mxu0 0
        %487 = vmatprep.subr.bf16.mxu0 0
        %488 = vmatpush1.bf16.msra.mxu0 0
        %489 = vmatprep.subr.bf16.mxu0 0
        %490 = vmatpush1.bf16.msra.mxu0 0
        %491 = vmatprep.subr.bf16.mxu0 0
        %492 = vmatpush1.bf16.msra.mxu0 0
        %493 = vmatprep.mubr.bf16.mxu0 0
        %494 = vmatmul.mubr.bf16.gmra.mrb[0].mxu0 %v391
        %v495 = vpop.f32.mrb[0].mxu0
        %v496 = vadd.f32 0.0, %v495
        %v497 = vpop.f32.mrb[0].mxu0
        %v498 = vpop.f32.mrb[0].mxu0
        %v499 = vadd.f32 0.0, %v498
        %v500 = vpop.f32.mrb[0].mxu0
        %501 = vmatprep.mubr.bf16.mxu0 0
        %502 = vmatmul.mubr.bf16.gmra.mrb[0].mxu0 %v392
        %v503 = vpop.f32.mrb[0].mxu0
        %v504 = vadd.f32 0.0, %v503
        %v505 = vpop.f32.mrb[0].mxu0
        %v506 = vpop.f32.mrb[0].mxu0
        %v507 = vadd.f32 0.0, %v506
        %v508 = vpop.f32.mrb[0].mxu0
        %509 = vdwg.mxu0
        %v510 = vadd.f32 %v393, %v496
        %v511 = vadd.f32 %v394, %v499
        %v512 = vadd.f32 %v395, %v504
        %v513 = vadd.f32 %v396, %v507
        %vm514 = vcmask 261120
        %515 = vst.msk [vmem:[#allocation2] sm:$0xff] %vm514, %v510
        %516 = vst.msk [vmem:[#allocation2 + $0x8] sm:$0xff] %vm514, %v511
        %517 = vst.msk [vmem:[#allocation2 + $0x10] sm:$0xff] %vm514, %v512
        %518 = vst.msk [vmem:[#allocation2 + $0x18] sm:$0xff] %vm514, %v513
        %v519 = vld [vmem:[#allocation3] sm:$0xff]
        %v520 = vld [vmem:[#allocation3 + $0x8] sm:$0xff]
        %v521 = vld [vmem:[#allocation3 + $0x10] sm:$0xff]
        %v522 = vld [vmem:[#allocation3 + $0x18] sm:$0xff]
        %v523 = vld [vmem:[%s334] sm:$0xf]
        %v524 = vld [vmem:[%s334 + $0x4] sm:$0xf]
        %v525 = vld [vmem:[%s334 + $0x8] sm:$0xf]
        %v526 = vld [vmem:[%s334 + $0xc] sm:$0xf]
        %v527 = vld [vmem:[%s334 + $0x10] sm:$0xf]
        %v528 = vld [vmem:[%s334 + $0x14] sm:$0xf]
        %v529 = vld [vmem:[%s334 + $0x18] sm:$0xf]
        %v530 = vld [vmem:[%s334 + $0x1c] sm:$0xf]
        %v531 = vld [vmem:[%s334 + $0x20] sm:$0xf]
        %v532 = vld [vmem:[%s334 + $0x24] sm:$0xf]
        %v533 = vld [vmem:[%s334 + $0x28] sm:$0xf]
        %v534 = vld [vmem:[%s334 + $0x2c] sm:$0xf]
        %v535 = vld [vmem:[%s334 + $0x30] sm:$0xf]
        %v536 = vld [vmem:[%s334 + $0x34] sm:$0xf]
        %v537 = vld [vmem:[%s334 + $0x38] sm:$0xf]
        %v538 = vld [vmem:[%s334 + $0x3c] sm:$0xf]
        %v555 = vunpack.c.l.b16 %v523
        %v556 = vunpack.c.l.b16 %v524
        %v557 = vunpack.c.l.b16 %v525
        %v558 = vunpack.c.l.b16 %v526
        %v559 = vunpack.c.l.b16 %v527
        %v560 = vunpack.c.l.b16 %v528
        %v561 = vunpack.c.l.b16 %v529
        %v562 = vunpack.c.l.b16 %v530
        %v563 = vunpack.c.l.b16 %v531
        %v564 = vunpack.c.l.b16 %v532
        %v565 = vunpack.c.l.b16 %v533
        %v566 = vunpack.c.l.b16 %v534
        %v567 = vunpack.c.l.b16 %v535
        %v568 = vunpack.c.l.b16 %v536
        %v569 = vunpack.c.l.b16 %v537
        %v570 = vunpack.c.l.b16 %v538
        %v571 = vpack.c.b16 %v556, %v555
        %v572 = vpack.c.b16 %v558, %v557
        %v573 = vpack.c.b16 %v560, %v559
        %v574 = vpack.c.b16 %v562, %v561
        %v575 = vpack.c.b16 %v564, %v563
        %v576 = vpack.c.b16 %v566, %v565
        %v577 = vpack.c.b16 %v568, %v567
        %v578 = vpack.c.b16 %v570, %v569
        %587 = vmatprep.subr.bf16.mxu0 0
        %588 = vmatpush1.bf16.msra.mxu0 %v571
        %589 = vmatprep.subr.bf16.mxu0 0
        %590 = vmatpush1.bf16.msra.mxu0 %v572
        %591 = vmatprep.subr.bf16.mxu0 0
        %592 = vmatpush1.bf16.msra.mxu0 %v573
        %593 = vmatprep.subr.bf16.mxu0 0
        %594 = vmatpush1.bf16.msra.mxu0 %v574
        %595 = vmatprep.subr.bf16.mxu0 0
        %596 = vmatpush1.bf16.msra.mxu0 %v575
        %597 = vmatprep.subr.bf16.mxu0 0
        %598 = vmatpush1.bf16.msra.mxu0 %v576
        %599 = vmatprep.subr.bf16.mxu0 0
        %600 = vmatpush1.bf16.msra.mxu0 %v577
        %601 = vmatprep.subr.bf16.mxu0 0
        %602 = vmatpush1.bf16.msra.mxu0 %v578
        %603 = vmatprep.subr.bf16.mxu0 0
        %604 = vmatpush1.bf16.msra.mxu0 0
        %605 = vmatprep.subr.bf16.mxu0 0
        %606 = vmatpush1.bf16.msra.mxu0 0
        %607 = vmatprep.subr.bf16.mxu0 0
        %608 = vmatpush1.bf16.msra.mxu0 0
        %609 = vmatprep.subr.bf16.mxu0 0
        %610 = vmatpush1.bf16.msra.mxu0 0
        %611 = vmatprep.subr.bf16.mxu0 0
        %612 = vmatpush1.bf16.msra.mxu0 0
        %613 = vmatprep.subr.bf16.mxu0 0
        %614 = vmatpush1.bf16.msra.mxu0 0
        %615 = vmatprep.subr.bf16.mxu0 0
        %616 = vmatpush1.bf16.msra.mxu0 0
        %617 = vmatprep.subr.bf16.mxu0 0
        %618 = vmatpush1.bf16.msra.mxu0 0
        %619 = vmatprep.mubr.bf16.mxu0 0
        %620 = vmatmul.mubr.bf16.gmra.mrb[0].mxu0 %v391
        %v621 = vpop.f32.mrb[0].mxu0
        %v622 = vadd.f32 0.0, %v621
        %v623 = vpop.f32.mrb[0].mxu0
        %v624 = vpop.f32.mrb[0].mxu0
        %v625 = vadd.f32 0.0, %v624
        %v626 = vpop.f32.mrb[0].mxu0
        %627 = vmatprep.mubr.bf16.mxu0 0
        %628 = vmatmul.mubr.bf16.gmra.mrb[0].mxu0 %v392
        %v629 = vpop.f32.mrb[0].mxu0
        %v630 = vadd.f32 0.0, %v629
        %v631 = vpop.f32.mrb[0].mxu0
        %v632 = vpop.f32.mrb[0].mxu0
        %v633 = vadd.f32 0.0, %v632
        %v634 = vpop.f32.mrb[0].mxu0
        %635 = vdwg.mxu0
        %v636 = vadd.f32 %v519, %v622
        %v637 = vadd.f32 %v520, %v625
        %v638 = vadd.f32 %v521, %v630
        %v639 = vadd.f32 %v522, %v633
        %vm640 = vcmask 64512
        %641 = vst.msk [vmem:[#allocation3] sm:$0xff] %vm640, %v636
        %642 = vst.msk [vmem:[#allocation3 + $0x8] sm:$0xff] %vm640, %v637
        %643 = vst.msk [vmem:[#allocation3 + $0x10] sm:$0xff] %vm640, %v638
        %644 = vst.msk [vmem:[#allocation3 + $0x18] sm:$0xff] %vm640, %v639
      $region56: #{_agg_pallas.1} parent=47 // pred_fallthru
        _
      %p645 = scmp.eq.s32.totalorder %s35, 2
      // Predicated region
      $region57: #{_agg_pallas.1} parent=47 // pred_check
        %p646 = pneg %p645
      $region58: #{_agg_pallas.1} parent=47 // pred_check_branch
        %648 = sbr.rel (%p646) target = $region60
      $region59: #{_agg_pallas.1} parent=47 // pred_region
        %v649 = vld [vmem:[#allocation2] sm:$0xff]
        %v650 = vld [vmem:[#allocation2 + $0x8] sm:$0xff]
        %v651 = vld [vmem:[#allocation2 + $0x10] sm:$0xff]
        %v652 = vld [vmem:[#allocation2 + $0x18] sm:$0xff]
        %v653 = vld [vmem:[#allocation3] sm:$0xff]
        %v654 = vld [vmem:[#allocation3 + $0x8] sm:$0xff]
        %v655 = vld [vmem:[#allocation3 + $0x10] sm:$0xff]
        %v656 = vld [vmem:[#allocation3 + $0x18] sm:$0xff]
        %v657 = vmul.f32 %v653, 256.0
        %v658 = vmul.f32 %v654, 256.0
        %v659 = vmul.f32 %v655, 256.0
        %v660 = vmul.f32 %v656, 256.0
        %665 = vrot.lane.b32.xlu0 %v653, 126
        %v666 = vpop.permute.xlu0 %665
        %667 = vrot.lane.b32.xlu0 %v654, 126
        %v668 = vpop.permute.xlu0 %667
        %669 = vrot.lane.b32.xlu0 %v655, 126
        %v670 = vpop.permute.xlu0 %669
        %671 = vrot.lane.b32.xlu0 %v656, 126
        %v672 = vpop.permute.xlu0 %671
        %v677 = vadd.f32 %v657, %v666
        %v678 = vadd.f32 %v658, %v668
        %v679 = vadd.f32 %v659, %v670
        %v680 = vadd.f32 %v660, %v672
        %v681 = vmax.f32 %v653, 1.0
        %v682 = vmax.f32 %v654, 1.0
        %v683 = vmax.f32 %v655, 1.0
        %v684 = vmax.f32 %v656, 1.0
        %686 = vset.pattern.permute.xlu0 4
        %687 = vperm.xlu0 %686, %v681
        %v688 = vpop.permute.xlu0 %687
        %691 = vset.pattern.permute.xlu0 4
        %692 = vperm.xlu0 %691, %v682
        %v693 = vpop.permute.xlu0 %692
        %696 = vset.pattern.permute.xlu0 4
        %697 = vperm.xlu0 %696, %v683
        %v698 = vpop.permute.xlu0 %697
        %701 = vset.pattern.permute.xlu0 4
        %702 = vperm.xlu0 %701, %v684
        %v703 = vpop.permute.xlu0 %702
        %v705 = vrcp.pop %v688
        %v706 = vmul.f32 %v677, %v705
        %v707 = vrcp.pop %v693
        %v708 = vmul.f32 %v678, %v707
        %v709 = vrcp.pop %v698
        %v710 = vmul.f32 %v679, %v709
        %v711 = vrcp.pop %v703
        %v712 = vmul.f32 %v680, %v711
        %v713 = vld [vmem:[%s5] sm:$0xff]
        %v714 = vld [vmem:[%s5 + $0x8] sm:$0xff]
        %v715 = vld [vmem:[%s5 + $0x10] sm:$0xff]
        %v716 = vld [vmem:[%s5 + $0x18] sm:$0xff]
        %v717 = vld [vmem:[%s6] sm:$0x1]
        %v719 = vlaneseq
        %v720 = vshrl.u32 %v719, 7
        %v721 = vsub.s32 0, %v720
        %v722 = vrot.slane %v717, %v721
        %vm724 = vcmask 261120
        %v726 = vsel %vm724, %v649, 0
        %v729 = vsel %vm724, %v650, 0
        %v732 = vsel %vm724, %v651, 0
        %v735 = vsel %vm724, %v652, 0
        %737 = vmatprep.subr.mxu0 0.0
        %738 = vmatpush1.msra.mxu0 %v713
        %739 = vmatprep.subr.mxu0 0.0
        %740 = vmatpush1.msra.mxu0 %v714
        %741 = vmatprep.subr.mxu0 0.0
        %742 = vmatpush1.msra.mxu0 %v715
        %743 = vmatprep.subr.mxu0 0.0
        %744 = vmatpush1.msra.mxu0 %v716
        %745 = vmatprep.subr.mxu0 0.0
        %746 = vmatpush1.msra.mxu0 0.0
        %747 = vmatprep.subr.mxu0 0.0
        %748 = vmatpush1.msra.mxu0 0.0
        %749 = vmatprep.subr.mxu0 0.0
        %750 = vmatpush1.msra.mxu0 0.0
        %751 = vmatprep.subr.mxu0 0.0
        %752 = vmatpush1.msra.mxu0 0.0
        %753 = vmatprep.subr.mxu0 0.0
        %754 = vmatpush1.msra.mxu0 0.0
        %755 = vmatprep.subr.mxu0 0.0
        %756 = vmatpush1.msra.mxu0 0.0
        %757 = vmatprep.subr.mxu0 0.0
        %758 = vmatpush1.msra.mxu0 0.0
        %759 = vmatprep.subr.mxu0 0.0
        %760 = vmatpush1.msra.mxu0 0.0
        %761 = vmatprep.subr.mxu0 0.0
        %762 = vmatpush1.msra.mxu0 0.0
        %763 = vmatprep.subr.mxu0 0.0
        %764 = vmatpush1.msra.mxu0 0.0
        %765 = vmatprep.subr.mxu0 0.0
        %766 = vmatpush1.msra.mxu0 0.0
        %767 = vmatprep.subr.mxu0 0.0
        %768 = vmatpush1.msra.mxu0 0.0
        %769 = vmatprep.subr.mxu0 0.0
        %770 = vmatpush1.msra.mxu0 0.0
        %771 = vmatprep.subr.mxu0 0.0
        %772 = vmatpush1.msra.mxu0 0.0
        %773 = vmatprep.subr.mxu0 0.0
        %774 = vmatpush1.msra.mxu0 0.0
        %775 = vmatprep.subr.mxu0 0.0
        %776 = vmatpush1.msra.mxu0 0.0
        %777 = vmatprep.subr.mxu0 0.0
        %778 = vmatpush1.msra.mxu0 0.0
        %779 = vmatprep.subr.mxu0 0.0
        %780 = vmatpush1.msra.mxu0 0.0
        %781 = vmatprep.subr.mxu0 0.0
        %782 = vmatpush1.msra.mxu0 0.0
        %783 = vmatprep.subr.mxu0 0.0
        %784 = vmatpush1.msra.mxu0 0.0
        %785 = vmatprep.subr.mxu0 0.0
        %786 = vmatpush1.msra.mxu0 0.0
        %787 = vmatprep.subr.mxu0 0.0
        %788 = vmatpush1.msra.mxu0 0.0
        %789 = vmatprep.subr.mxu0 0.0
        %790 = vmatpush1.msra.mxu0 0.0
        %791 = vmatprep.subr.mxu0 0.0
        %792 = vmatpush1.msra.mxu0 0.0
        %793 = vmatprep.subr.mxu0 0.0
        %794 = vmatpush1.msra.mxu0 0.0
        %795 = vmatprep.subr.mxu0 0.0
        %796 = vmatpush1.msra.mxu0 0.0
        %797 = vmatprep.subr.mxu0 0.0
        %798 = vmatpush1.msra.mxu0 0.0
        %799 = vmatprep.subr.mxu0 0.0
        %800 = vmatpush1.msra.mxu0 0.0
        %801 = vmatprep.mubr.f32.mxu0 0.0
        %802 = vmatmul.mubr.f32.gmra.mrb[0].mxu0 %v726
        %v803 = vpop.f32.mrb[0].mxu0
        %v804 = vadd.f32 %v722, %v803
        %v805 = vpop.f32.mrb[0].mxu0
        %806 = vmatprep.mubr.f32.mxu0 0.0
        %807 = vmatmul.mubr.f32.gmra.mrb[0].mxu0 %v729
        %v808 = vpop.f32.mrb[0].mxu0
        %v809 = vadd.f32 %v722, %v808
        %v810 = vpop.f32.mrb[0].mxu0
        %811 = vmatprep.mubr.f32.mxu0 0.0
        %812 = vmatmul.mubr.f32.gmra.mrb[0].mxu0 %v732
        %v813 = vpop.f32.mrb[0].mxu0
        %v814 = vadd.f32 %v722, %v813
        %v815 = vpop.f32.mrb[0].mxu0
        %816 = vmatprep.mubr.f32.mxu0 0.0
        %817 = vmatmul.mubr.f32.gmra.mrb[0].mxu0 %v735
        %v818 = vpop.f32.mrb[0].mxu0
        %v819 = vadd.f32 %v722, %v818
        %v820 = vpop.f32.mrb[0].mxu0
        %821 = vdwg.mxu0
        %v822 = vmax.f32 %v804, 0.0
        %v823 = vmax.f32 %v809, 0.0
        %v824 = vmax.f32 %v814, 0.0
        %v825 = vmax.f32 %v819, 0.0
        %v826 = vld [vmem:[%s7] sm:$0xff]
        %v827 = vld [vmem:[%s7 + $0x8] sm:$0xff]
        %v828 = vld [vmem:[%s7 + $0x10] sm:$0xff]
        %v829 = vld [vmem:[%s7 + $0x18] sm:$0xff]
        %v830 = vld [vmem:[%s8] sm:$0x1]
        %v832 = vlaneseq
        %v833 = vshrl.u32 %v832, 7
        %v834 = vsub.s32 0, %v833
        %v835 = vrot.slane %v830, %v834
        %v838 = vsel %vm724, %v822, 0
        %v841 = vsel %vm724, %v823, 0
        %v844 = vsel %vm724, %v824, 0
        %v847 = vsel %vm724, %v825, 0
        %849 = vmatprep.subr.mxu0 0.0
        %850 = vmatpush1.msra.mxu0 %v826
        %851 = vmatprep.subr.mxu0 0.0
        %852 = vmatpush1.msra.mxu0 %v827
        %853 = vmatprep.subr.mxu0 0.0
        %854 = vmatpush1.msra.mxu0 %v828
        %855 = vmatprep.subr.mxu0 0.0
        %856 = vmatpush1.msra.mxu0 %v829
        %857 = vmatprep.subr.mxu0 0.0
        %858 = vmatpush1.msra.mxu0 0.0
        %859 = vmatprep.subr.mxu0 0.0
        %860 = vmatpush1.msra.mxu0 0.0
        %861 = vmatprep.subr.mxu0 0.0
        %862 = vmatpush1.msra.mxu0 0.0
        %863 = vmatprep.subr.mxu0 0.0
        %864 = vmatpush1.msra.mxu0 0.0
        %865 = vmatprep.subr.mxu0 0.0
        %866 = vmatpush1.msra.mxu0 0.0
        %867 = vmatprep.subr.mxu0 0.0
        %868 = vmatpush1.msra.mxu0 0.0
        %869 = vmatprep.subr.mxu0 0.0
        %870 = vmatpush1.msra.mxu0 0.0
        %871 = vmatprep.subr.mxu0 0.0
        %872 = vmatpush1.msra.mxu0 0.0
        %873 = vmatprep.subr.mxu0 0.0
        %874 = vmatpush1.msra.mxu0 0.0
        %875 = vmatprep.subr.mxu0 0.0
        %876 = vmatpush1.msra.mxu0 0.0
        %877 = vmatprep.subr.mxu0 0.0
        %878 = vmatpush1.msra.mxu0 0.0
        %879 = vmatprep.subr.mxu0 0.0
        %880 = vmatpush1.msra.mxu0 0.0
        %881 = vmatprep.subr.mxu0 0.0
        %882 = vmatpush1.msra.mxu0 0.0
        %883 = vmatprep.subr.mxu0 0.0
        %884 = vmatpush1.msra.mxu0 0.0
        %885 = vmatprep.subr.mxu0 0.0
        %886 = vmatpush1.msra.mxu0 0.0
        %887 = vmatprep.subr.mxu0 0.0
        %888 = vmatpush1.msra.mxu0 0.0
        %889 = vmatprep.subr.mxu0 0.0
        %890 = vmatpush1.msra.mxu0 0.0
        %891 = vmatprep.subr.mxu0 0.0
        %892 = vmatpush1.msra.mxu0 0.0
        %893 = vmatprep.subr.mxu0 0.0
        %894 = vmatpush1.msra.mxu0 0.0
        %895 = vmatprep.subr.mxu0 0.0
        %896 = vmatpush1.msra.mxu0 0.0
        %897 = vmatprep.subr.mxu0 0.0
        %898 = vmatpush1.msra.mxu0 0.0
        %899 = vmatprep.subr.mxu0 0.0
        %900 = vmatpush1.msra.mxu0 0.0
        %901 = vmatprep.subr.mxu0 0.0
        %902 = vmatpush1.msra.mxu0 0.0
        %903 = vmatprep.subr.mxu0 0.0
        %904 = vmatpush1.msra.mxu0 0.0
        %905 = vmatprep.subr.mxu0 0.0
        %906 = vmatpush1.msra.mxu0 0.0
        %907 = vmatprep.subr.mxu0 0.0
        %908 = vmatpush1.msra.mxu0 0.0
        %909 = vmatprep.subr.mxu0 0.0
        %910 = vmatpush1.msra.mxu0 0.0
        %911 = vmatprep.subr.mxu0 0.0
        %912 = vmatpush1.msra.mxu0 0.0
        %913 = vmatprep.mubr.f32.mxu0 0.0
        %914 = vmatmul.mubr.f32.gmra.mrb[0].mxu0 %v838
        %v915 = vpop.f32.mrb[0].mxu0
        %v916 = vadd.f32 %v835, %v915
        %v917 = vpop.f32.mrb[0].mxu0
        %918 = vmatprep.mubr.f32.mxu0 0.0
        %919 = vmatmul.mubr.f32.gmra.mrb[0].mxu0 %v841
        %v920 = vpop.f32.mrb[0].mxu0
        %v921 = vadd.f32 %v835, %v920
        %v922 = vpop.f32.mrb[0].mxu0
        %923 = vmatprep.mubr.f32.mxu0 0.0
        %924 = vmatmul.mubr.f32.gmra.mrb[0].mxu0 %v844
        %v925 = vpop.f32.mrb[0].mxu0
        %v926 = vadd.f32 %v835, %v925
        %v927 = vpop.f32.mrb[0].mxu0
        %928 = vmatprep.mubr.f32.mxu0 0.0
        %929 = vmatmul.mubr.f32.gmra.mrb[0].mxu0 %v847
        %v930 = vpop.f32.mrb[0].mxu0
        %v931 = vadd.f32 %v835, %v930
        %v932 = vpop.f32.mrb[0].mxu0
        %933 = vdwg.mxu0
        %934 = vst [vmem:[%s340] sm:$0xff] %v916
        %935 = vst [vmem:[%s340 + $0x8] sm:$0xff] %v921
        %936 = vst [vmem:[%s340 + $0x10] sm:$0xff] %v926
        %937 = vst [vmem:[%s340 + $0x18] sm:$0xff] %v931
        %942 = vrot.lane.b32.xlu0 %v706, 32
        %v943 = vpop.permute.xlu0 %942
        %944 = vrot.lane.b32.xlu0 %v708, 32
        %v945 = vpop.permute.xlu0 %944
        %946 = vrot.lane.b32.xlu0 %v710, 32
        %v947 = vpop.permute.xlu0 %946
        %948 = vrot.lane.b32.xlu0 %v712, 32
        %v949 = vpop.permute.xlu0 %948
        %vm954 = vcmask 277760
        %955 = vst.msk [vmem:[%s340] sm:$0xff] %vm954, %v943
        %956 = vst.msk [vmem:[%s340 + $0x8] sm:$0xff] %vm954, %v945
        %957 = vst.msk [vmem:[%s340 + $0x10] sm:$0xff] %vm954, %v947
        %958 = vst.msk [vmem:[%s340 + $0x18] sm:$0xff] %vm954, %v949
        %959 = vrot.lane.b32.xlu0 %v653, 30
        %v960 = vpop.permute.xlu0 %959
        %961 = vrot.lane.b32.xlu0 %v654, 30
        %v962 = vpop.permute.xlu0 %961
        %963 = vrot.lane.b32.xlu0 %v655, 30
        %v964 = vpop.permute.xlu0 %963
        %965 = vrot.lane.b32.xlu0 %v656, 30
        %v966 = vpop.permute.xlu0 %965
        %vm971 = vcmask 285968
        %972 = vst.msk [vmem:[%s340] sm:$0xff] %vm971, %v960
        %973 = vst.msk [vmem:[%s340 + $0x8] sm:$0xff] %vm971, %v962
        %974 = vst.msk [vmem:[%s340 + $0x10] sm:$0xff] %vm971, %v964
        %975 = vst.msk [vmem:[%s340 + $0x18] sm:$0xff] %vm971, %v966
      $region60: #{_agg_pallas.1} parent=47 // pred_fallthru
        _
      %s976 = smul.u32 4, %s34
      %p977 = scmp.lt.s32.totalorder %s976, 7
      %s978 = scalar_select %p977, %s976, 7
      %s979 = smul.addr %s978, 8
      %s980 = scalar_lea.vmem %s9, %s979
      // Predicated region
      $region61: #{_agg_pallas.1} parent=47 // pred_check
        %p981 = pneg %p222
      $region62: #{_agg_pallas.1} parent=47 // pred_check_branch
        %983 = sbr.rel (%p981) target = $region64
      $region63: #{_agg_pallas.1} parent=47 // pred_region
        %s984 = smul.u32 4, %s34
      $region64: #{_agg_pallas.1} parent=47 // pred_fallthru
        _
    $region48: #{_agg_pallas.1} parent=5 // pred_fallthru
      _
    %p985 = scmp.le.s32.totalorder 2, %s25
    // Predicated region
    $region65: #{_agg_pallas.1} parent=5 // pred_check
      %p986 = pneg %p985
    $region66: #{_agg_pallas.1} parent=5 // pred_check_branch
      %988 = sbr.rel (%p986) target = $region68
    $region67: #{_agg_pallas.1} parent=5 // pred_region
      %s989 = ssub.s32 %s25, 2
      // Predicated region
      $region69: #{_agg_pallas.1} parent=67 // pred_check
        %p990 = pneg %p228
      $region70: #{_agg_pallas.1} parent=67 // pred_check_branch
        %992 = sbr.rel (%p990) target = $region72
      $region71: #{_agg_pallas.1} parent=67 // pred_region
        %s993 = smul.u32 4, %s36
        %p994 = scmp.lt.s32.totalorder %s993, 7
        %s995 = scalar_select %p994, %s993, 7
        %s996 = smul.addr %s995, 8
        %s997 = scalar_lea.vmem %s9, %s996
      $region72: #{_agg_pallas.1} parent=67 // pred_fallthru
        _
    $region68: #{_agg_pallas.1} parent=5 // pred_fallthru
      _
  $region6: #{_agg_pallas.1} parent=0 // loop_footer
    %s29 = sadd.s32 1, %s25
  $region7: #{_agg_pallas.1} parent=0 // loop_footer_branch
    %24 = sbr.rel target = $region3
  $region8: #{_agg_pallas.1} parent=0 // loop_exit
    _

</llo_original>
